<compile_context>
chip_gen: v7x
topology: tpu7x:2x2x1
jax: 0.10.0
libtpu: 0.0.40
codegen_flags: <defaults>
</compile_context>

<pallas_src>
import jax
import jax.numpy as jnp
import numpy as np
from jax.experimental import pallas as pl
from jax.experimental.pallas import tpu as pltpu


def _round_up(x, m):
    return ((x + m - 1) // m) * m


def linear_kernel(x_ref, wt_ref, b_ref, o_ref):
    # x_ref:  (tm, K)   row tile of the input
    # wt_ref: (K, tn)   column tile of the transposed weight
    # b_ref:  (1, tn)   matching bias tile (block index only changes on the
    #                   outer N axis, so it is not re-DMA'd per inner step)
    # o_ref:  (tm, tn)  output tile
    acc = jnp.dot(x_ref[...], wt_ref[...], preferred_element_type=jnp.float32)
    o_ref[...] = (acc + b_ref[...].astype(jnp.float32)).astype(o_ref.dtype)


def resize_block(x, wt, b, *, tn_max=8192, vmem_budget=24 << 20, out_dtype=None):
    """y = x @ wt + b  (equivalent to torch.nn.Linear forward).

    x:  (M, K)      activations (f32 or bf16)
    wt: (K, N)      transposed weight (f32 or bf16)
    b:  (N,)        bias (kept in f32 for accuracy)
    """
    M, K = x.shape
    K2, N = wt.shape
    assert K == K2 and b.shape == (N,)
    if out_dtype is None:
        out_dtype = x.dtype

    x_isz = x.dtype.itemsize
    w_isz = wt.dtype.itemsize
    b_isz = b.dtype.itemsize
    o_isz = np.dtype(out_dtype).itemsize

    # ---- tile sizing -------------------------------------------------------
    # Row tile: the usual small-batch case keeps all rows in one tile (padded
    # to the 8-sublane multiple); large batches use 256-row tiles so the MXU
    # sees a tall LHS while Wt is still fetched only once per N tile.
    if M <= 256:
        tm = _round_up(M, 8)
    else:
        tm = 256
    M_pad = _round_up(M, tm)

    # N tile: as wide as the VMEM budget allows (lane-dense output, amortizes
    # per-grid-step overhead). Pallas double-buffers every operand, so the
    # per-step footprint is 2 * (x + Wt + bias + out) tiles.
    per_lane_bytes = 2 * (K * w_isz + b_isz + tm * o_isz)
    fixed_bytes = 2 * tm * K * x_isz
    tn_fit = max(128, (vmem_budget - fixed_bytes) // max(per_lane_bytes, 1))
    tn = min(_round_up(N, 128), tn_max, (tn_fit // 128) * 128)
    N_pad = _round_up(N, tn)

    # ---- pad operands (handles N % 128 != 0, e.g. output_dim = 64800) -------
    x_p = jnp.pad(x, ((0, M_pad - M), (0, 0))) if M_pad != M else x
    wt_p = jnp.pad(wt, ((0, 0), (0, N_pad - N))) if N_pad != N else wt
    b_p = (jnp.pad(b, (0, N_pad - N)) if N_pad != N else b).reshape(1, N_pad)

    gn, gm = N_pad // tn, M_pad // tm

    bytes_accessed = (x.size * x_isz + wt.size * w_isz + b.size * b_isz
                      + M * N * o_isz)
    cost = pl.CostEstimate(flops=2 * M * K * N,
                           transcendentals=0,
                           bytes_accessed=bytes_accessed)

    out_p = pl.pallas_call(
        linear_kernel,
        out_shape=jax.ShapeDtypeStruct((M_pad, N_pad), out_dtype),
        grid_spec=pltpu.PrefetchScalarGridSpec(
            num_scalar_prefetch=0,
            # N-tiles OUTER, row-tiles INNER: Wt (the dominant HBM traffic) and
            # its bias tile are fetched exactly gn times total; only the tiny
            # (tm, K) x tile is re-read on the inner axis.
            grid=(gn, gm),
            in_specs=[
                pl.BlockSpec((tm, K), lambda j, i: (i, 0)),   # x row tile
                pl.BlockSpec((K, tn), lambda j, i: (0, j)),   # Wt column tile
                pl.BlockSpec((1, tn), lambda j, i: (0, j)),   # bias tile
            ],
            out_specs=pl.BlockSpec((tm, tn), lambda j, i: (i, j)),
        ),
        compiler_params=pltpu.CompilerParams(
            dimension_semantics=("parallel", "parallel")),
        cost_estimate=cost,
    )(x_p, wt_p, b_p)

    return out_p[:M, :N]


if __name__ == "__main__":
    # Small shapes consistent with the module: batch=8, input_dim=32.
    # output_dim deliberately NOT a multiple of 128 to exercise the padding
    # path that the module's default output_dim=64800 also needs.
    batch, input_dim, output_dim = 8, 32, 300

    key = jax.random.PRNGKey(0)
    kx, kw, kb = jax.random.split(key, 3)

    x = jax.random.normal(kx, (batch, input_dim), dtype=jnp.float32)
    # Deterministic synthetic params (PyTorch uses kaiming-uniform; any
    # deterministic init is fine for a synthetic kernel check).
    w = jax.random.normal(kw, (output_dim, input_dim), dtype=jnp.float32) * 0.02
    b = jax.random.normal(kb, (output_dim,), dtype=jnp.float32) * 0.02
    wt = w.T  # (input_dim, output_dim)

    y_ref = x @ wt + b

    # f32 path (strict check).
    y = resize_block(x, wt, b)
    jax.block_until_ready(y)
    assert y.shape == (batch, output_dim)
    assert jnp.allclose(y, y_ref, atol=1e-4, rtol=1e-4)

    # bf16 weights/activations path: halves the dominant HBM traffic of this
    # memory-bound kernel; accumulation stays f32 on the MXU.
    y_bf16 = resize_block(x.astype(jnp.bfloat16), wt.astype(jnp.bfloat16), b,
                          out_dtype=jnp.float32)
    jax.block_until_ready(y_bf16)
    assert jnp.allclose(y_bf16, y_ref, atol=2e-2, rtol=2e-2)

    print("KERNEL_OK")
</pallas_src>

<mosaic_0001>
module attributes {stable_mosaic.version = 11 : i64} {
  func.func @linear_kernel(%arg0: i32, %arg1: i32, %arg2: memref<8x32xf32, #tpu.memory_space<vmem>>, %arg3: memref<32x384xf32, #tpu.memory_space<vmem>>, %arg4: memref<1x384xf32, #tpu.memory_space<vmem>>, %arg5: memref<8x384xf32, #tpu.memory_space<vmem>>) attributes {dimension_semantics = [#tpu.dimension_semantics<parallel>, #tpu.dimension_semantics<parallel>], iteration_bounds = array<i64: 1, 1>, scalar_prefetch = 0 : i64, scratch_operands = 0 : i64, tpu.core_type = #tpu.core_type<tc>, window_params = [{transform_indices = @transform_0, window_bounds = array<i64: 8, 32>}, {transform_indices = @transform_1, window_bounds = array<i64: 32, 384>}, {transform_indices = @transform_2, window_bounds = array<i64: 1, 384>}, {transform_indices = @transform_3, window_bounds = array<i64: 8, 384>}]} {
    %c0 = arith.constant 0 : index
    %c0_0 = arith.constant 0 : index
    %0 = vector.load %arg2[%c0, %c0_0] : memref<8x32xf32, #tpu.memory_space<vmem>>, vector<8x32xf32>
    %c0_1 = arith.constant 0 : index
    %c0_2 = arith.constant 0 : index
    %1 = vector.load %arg3[%c0_1, %c0_2] : memref<32x384xf32, #tpu.memory_space<vmem>>, vector<32x384xf32>
    %cst = arith.constant dense<0.000000e+00> : vector<8x384xf32>
    %2 = tpu.matmul %0, %1, %cst {dimension_numbers = #tpu.dot_dimension_numbers<[1], [0], [0], [1], [0, 0, 1, 1], [], []>} : vector<8x32xf32>, vector<32x384xf32>, vector<8x384xf32> -> vector<8x384xf32>
    %c0_3 = arith.constant 0 : index
    %c0_4 = arith.constant 0 : index
    %3 = vector.load %arg4[%c0_3, %c0_4] : memref<1x384xf32, #tpu.memory_space<vmem>>, vector<1x384xf32>
    %4 = vector.broadcast %3 : vector<1x384xf32> to vector<8x384xf32>
    %5 = arith.addf %2, %4 : vector<8x384xf32>
    %c0_5 = arith.constant 0 : index
    %c0_6 = arith.constant 0 : index
    %6 = vector.load %arg5[%c0_5, %c0_6] : memref<8x384xf32, #tpu.memory_space<vmem>>, vector<8x384xf32>
    tpu.vector_store %arg5[%c0_5, %c0_6], %5 {strides = array<i32>} : memref<8x384xf32, #tpu.memory_space<vmem>>, vector<8x384xf32>,
    return
  }
  func.func @transform_0(%arg0: i32, %arg1: i32) -> (i32, i32) {
    %c0_i32 = arith.constant 0 : i32
    %c0_i32_0 = arith.constant 0 : i32
    return %arg1, %c0_i32 : i32, i32
  }
  func.func @transform_1(%arg0: i32, %arg1: i32) -> (i32, i32) {
    %c0_i32 = arith.constant 0 : i32
    %c0_i32_0 = arith.constant 0 : i32
    return %c0_i32, %arg0 : i32, i32
  }
  func.func @transform_2(%arg0: i32, %arg1: i32) -> (i32, i32) {
    %c0_i32 = arith.constant 0 : i32
    %c0_i32_0 = arith.constant 0 : i32
    return %c0_i32, %arg0 : i32, i32
  }
  func.func @transform_3(%arg0: i32, %arg1: i32) -> (i32, i32) {
    %c0_i32 = arith.constant 0 : i32
    return %arg1, %arg0 : i32, i32
  }
}

</mosaic_0001>

<llo_original>
// kernel: tpu_custom_call.1
$region0: #{tpu_custom_call.1}
  #allocation0 [shape = 'u32[]', space=smem, size = 0x4, offset = 0x4, fixed_abs, tag = 'smem constant byte address 0x4 - core index']
  #allocation1 [shape = 'u32[144,128]{1,0:T(1,128)}', space=vmem, size = 0x12000, scoped, tag = 'internal scratch']
  %s0 = inlined_call_operand.hbm [shape: f32[8,32], index: 0, kind: input, shape index: {}]
  %s1 = inlined_call_operand.hbm [shape: f32[32,384], index: 1, kind: input, shape index: {}]
  %s2 = inlined_call_operand.vmem [shape: f32[1,384], index: 2, kind: input, shape index: {}]
  %s3 = inlined_call_operand.hbm [shape: f32[8,384], index: 3, kind: output, shape index: {}]
  %s4 = sld [smem:[#allocation0]]
  $region30: #{tpu_custom_call.1} parent=0
    _
  %s6 = ssub.s32 1, %s4
  %s7 = scalar_select 0, %s6, %s4
  $region1: #{tpu_custom_call.1} parent=0
    #allocation2 [shape = 'u8[4096]{0}', space=vmem, size = 0x1000, scoped, tag = 'input window, operand 0, single buffered']
    #allocation3 [shape = 's32[1]{0}', space=sflag, size = 0x4, scoped, tag = 'scoped memory for tpu_custom_call.1']
    #allocation4 [shape = 's32[1]{0}', space=sflag, size = 0x4, scoped, tag = 'scoped memory for tpu_custom_call.1']
    #allocation5 [shape = 'u8[49152]{0}', space=vmem, size = 0xc000, scoped, tag = 'input window, operand 1, single buffered']
    #allocation6 [shape = 's32[1]{0}', space=sflag, size = 0x4, scoped, tag = 'scoped memory for tpu_custom_call.1']
    #allocation7 [shape = 'u8[12288]{0}', space=vmem, size = 0x3000, scoped, tag = 'output window, operand 0, single buffered']
    %8 = vsyncpa [#allocation3], 0
    %9 = vsyncpa [#allocation6], 0
    %10 = vsyncpa [#allocation4], 0
    // Predicated region
    $region2: #{tpu_custom_call.1} parent=1 // pred_check
      _
    $region3: #{tpu_custom_call.1} parent=1 // pred_check_branch
      %12 = sbr.rel (0) target = $region5
    $region4: #{tpu_custom_call.1} parent=1 // pred_region
      %s14 = ssub.s32 128, 128
      %15 = vsyncadd [#allocation3], %s14
      %s17 = sshll.u32 [#allocation2], 4
      %s18 = int_to_ptr.vmem [resolvable:$true] %s17
      %20 = dma.hbm_to_vmem [thread:$0]  %s0, 128, %s18, [#allocation3]
    $region5: #{tpu_custom_call.1} parent=1 // pred_fallthru
      _
    // Predicated region
    $region6: #{tpu_custom_call.1} parent=1 // pred_check
      _
    $region7: #{tpu_custom_call.1} parent=1 // pred_check_branch
      %22 = sbr.rel (0) target = $region9
    $region8: #{tpu_custom_call.1} parent=1 // pred_region
      %s24 = ssub.s32 1536, 1536
      %25 = vsyncadd [#allocation6], %s24
      %s26 = sshll.u32 [#allocation5], 4
      %s27 = int_to_ptr.vmem [resolvable:$true] %s26
      %32 = dma.hbm_to_vmem [thread:$0]  %s1, 1536, %s27, [#allocation6], 384, 384, 24
    $region9: #{tpu_custom_call.1} parent=1 // pred_fallthru
      _
    // Predicated region
    $region10: #{tpu_custom_call.1} parent=1 // pred_check
      _
    $region11: #{tpu_custom_call.1} parent=1 // pred_check_branch
      %34 = sbr.rel (0) target = $region13
    $region12: #{tpu_custom_call.1} parent=1 // pred_region
      _
    $region13: #{tpu_custom_call.1} parent=1 // pred_fallthru
      _
    // Predicated region
    $region14: #{tpu_custom_call.1} parent=1 // pred_check
      _
    $region15: #{tpu_custom_call.1} parent=1 // pred_check_branch
      %36 = sbr.rel (0) target = $region17
    $region16: #{tpu_custom_call.1} parent=1 // pred_region
      %37 = dma.done [#allocation3], 128
    $region17: #{tpu_custom_call.1} parent=1 // pred_fallthru
      _
    // Predicated region
    $region18: #{tpu_custom_call.1} parent=1 // pred_check
      _
    $region19: #{tpu_custom_call.1} parent=1 // pred_check_branch
      %39 = sbr.rel (0) target = $region21
    $region20: #{tpu_custom_call.1} parent=1 // pred_region
      %40 = dma.done [#allocation6], 1536
    $region21: #{tpu_custom_call.1} parent=1 // pred_fallthru
      _
    %v41 = vld [vmem:[#allocation2] sm:$0xff]
    %v42 = vld [vmem:[#allocation5] sm:$0xff]
    %v43 = vld [vmem:[#allocation5 + $0x8] sm:$0xff]
    %v44 = vld [vmem:[#allocation5 + $0x10] sm:$0xff]
    %v45 = vld [vmem:[#allocation5 + $0x18] sm:$0xff]
    %v46 = vld [vmem:[#allocation5 + $0x20] sm:$0xff]
    %v47 = vld [vmem:[#allocation5 + $0x28] sm:$0xff]
    %v48 = vld [vmem:[#allocation5 + $0x30] sm:$0xff]
    %v49 = vld [vmem:[#allocation5 + $0x38] sm:$0xff]
    %v50 = vld [vmem:[#allocation5 + $0x40] sm:$0xff]
    %v51 = vld [vmem:[#allocation5 + $0x48] sm:$0xff]
    %v52 = vld [vmem:[#allocation5 + $0x50] sm:$0xff]
    %v53 = vld [vmem:[#allocation5 + $0x58] sm:$0xff]
    %v54 = vld [vmem:[%s2] sm:$0x7]
    %v56 = vlaneseq
    %v57 = vshrl.u32 %v56, 7
    %v58 = vsub.s32 0, %v57
    %v59 = vrot.slane %v54, %v58
    %v60 = vlaneseq
    %v61 = vshrl.u32 %v60, 7
    %v62 = vsub.s32 1, %v61
    %v63 = vrot.slane %v54, %v62
    %v64 = vlaneseq
    %v65 = vshrl.u32 %v64, 7
    %v66 = vsub.s32 2, %v65
    %v67 = vrot.slane %v54, %v66
    %vm71 = vcmask 261120
    %v73 = vsel %vm71, %v41, 0
    %75 = vmatprep.subr.mxu0 %v43
    %76 = vmatpush1.msra.mxu0 %v42
    %77 = vmatprep.subr.mxu0 %v46
    %78 = vmatpush1.msra.mxu0 %v45
    %79 = vmatprep.subr.mxu0 %v49
    %80 = vmatpush1.msra.mxu0 %v48
    %81 = vmatprep.subr.mxu0 %v52
    %82 = vmatpush1.msra.mxu0 %v51
    %83 = vmatprep.subr.mxu0 0.0
    %84 = vmatpush1.msra.mxu0 0.0
    %85 = vmatprep.subr.mxu0 0.0
    %86 = vmatpush1.msra.mxu0 0.0
    %87 = vmatprep.subr.mxu0 0.0
    %88 = vmatpush1.msra.mxu0 0.0
    %89 = vmatprep.subr.mxu0 0.0
    %90 = vmatpush1.msra.mxu0 0.0
    %91 = vmatprep.subr.mxu0 0.0
    %92 = vmatpush1.msra.mxu0 0.0
    %93 = vmatprep.subr.mxu0 0.0
    %94 = vmatpush1.msra.mxu0 0.0
    %95 = vmatprep.subr.mxu0 0.0
    %96 = vmatpush1.msra.mxu0 0.0
    %97 = vmatprep.subr.mxu0 0.0
    %98 = vmatpush1.msra.mxu0 0.0
    %99 = vmatprep.subr.mxu0 0.0
    %100 = vmatpush1.msra.mxu0 0.0
    %101 = vmatprep.subr.mxu0 0.0
    %102 = vmatpush1.msra.mxu0 0.0
    %103 = vmatprep.subr.mxu0 0.0
    %104 = vmatpush1.msra.mxu0 0.0
    %105 = vmatprep.subr.mxu0 0.0
    %106 = vmatpush1.msra.mxu0 0.0
    %107 = vmatprep.subr.mxu0 0.0
    %108 = vmatpush1.msra.mxu0 0.0
    %109 = vmatprep.subr.mxu0 0.0
    %110 = vmatpush1.msra.mxu0 0.0
    %111 = vmatprep.subr.mxu0 0.0
    %112 = vmatpush1.msra.mxu0 0.0
    %113 = vmatprep.subr.mxu0 0.0
    %114 = vmatpush1.msra.mxu0 0.0
    %115 = vmatprep.subr.mxu0 0.0
    %116 = vmatpush1.msra.mxu0 0.0
    %117 = vmatprep.subr.mxu0 0.0
    %118 = vmatpush1.msra.mxu0 0.0
    %119 = vmatprep.subr.mxu0 0.0
    %120 = vmatpush1.msra.mxu0 0.0
    %121 = vmatprep.subr.mxu0 0.0
    %122 = vmatpush1.msra.mxu0 0.0
    %123 = vmatprep.subr.mxu0 0.0
    %124 = vmatpush1.msra.mxu0 0.0
    %125 = vmatprep.subr.mxu0 0.0
    %126 = vmatpush1.msra.mxu0 0.0
    %127 = vmatprep.subr.mxu0 0.0
    %128 = vmatpush1.msra.mxu0 0.0
    %129 = vmatprep.subr.mxu0 0.0
    %130 = vmatpush1.msra.mxu0 0.0
    %131 = vmatprep.subr.mxu0 0.0
    %132 = vmatpush1.msra.mxu0 0.0
    %133 = vmatprep.subr.mxu0 0.0
    %134 = vmatpush1.msra.mxu0 0.0
    %135 = vmatprep.subr.mxu0 0.0
    %136 = vmatpush1.msra.mxu0 0.0
    %137 = vmatprep.subr.mxu0 0.0
    %138 = vmatpush1.msra.mxu0 0.0
    %139 = vmatprep.mubr.f32.mxu0 0.0
    %140 = vmatmul.mubr.f32.gmra.mrb[0].mxu0 %v73
    %v141 = vpop.f32.mrb[0].mxu0
    %v142 = vadd.f32 %v59, %v141
    %v143 = vpop.f32.mrb[0].mxu0
    %v144 = vadd.f32 %v63, %v143
    %145 = vdwg.mxu0
    %146 = vmatprep.subr.mxu0 0.0
    %147 = vmatpush1.msra.mxu0 %v44
    %148 = vmatprep.subr.mxu0 0.0
    %149 = vmatpush1.msra.mxu0 %v47
    %150 = vmatprep.subr.mxu0 0.0
    %151 = vmatpush1.msra.mxu0 %v50
    %152 = vmatprep.subr.mxu0 0.0
    %153 = vmatpush1.msra.mxu0 %v53
    %154 = vmatprep.subr.mxu0 0.0
    %155 = vmatpush1.msra.mxu0 0.0
    %156 = vmatprep.subr.mxu0 0.0
    %157 = vmatpush1.msra.mxu0 0.0
    %158 = vmatprep.subr.mxu0 0.0
    %159 = vmatpush1.msra.mxu0 0.0
    %160 = vmatprep.subr.mxu0 0.0
    %161 = vmatpush1.msra.mxu0 0.0
    %162 = vmatprep.subr.mxu0 0.0
    %163 = vmatpush1.msra.mxu0 0.0
    %164 = vmatprep.subr.mxu0 0.0
    %165 = vmatpush1.msra.mxu0 0.0
    %166 = vmatprep.subr.mxu0 0.0
    %167 = vmatpush1.msra.mxu0 0.0
    %168 = vmatprep.subr.mxu0 0.0
    %169 = vmatpush1.msra.mxu0 0.0
    %170 = vmatprep.subr.mxu0 0.0
    %171 = vmatpush1.msra.mxu0 0.0
    %172 = vmatprep.subr.mxu0 0.0
    %173 = vmatpush1.msra.mxu0 0.0
    %174 = vmatprep.subr.mxu0 0.0
    %175 = vmatpush1.msra.mxu0 0.0
    %176 = vmatprep.subr.mxu0 0.0
    %177 = vmatpush1.msra.mxu0 0.0
    %178 = vmatprep.subr.mxu0 0.0
    %179 = vmatpush1.msra.mxu0 0.0
    %180 = vmatprep.subr.mxu0 0.0
    %181 = vmatpush1.msra.mxu0 0.0
    %182 = vmatprep.subr.mxu0 0.0
    %183 = vmatpush1.msra.mxu0 0.0
    %184 = vmatprep.subr.mxu0 0.0
    %185 = vmatpush1.msra.mxu0 0.0
    %186 = vmatprep.subr.mxu0 0.0
    %187 = vmatpush1.msra.mxu0 0.0
    %188 = vmatprep.subr.mxu0 0.0
    %189 = vmatpush1.msra.mxu0 0.0
    %190 = vmatprep.subr.mxu0 0.0
    %191 = vmatpush1.msra.mxu0 0.0
    %192 = vmatprep.subr.mxu0 0.0
    %193 = vmatpush1.msra.mxu0 0.0
    %194 = vmatprep.subr.mxu0 0.0
    %195 = vmatpush1.msra.mxu0 0.0
    %196 = vmatprep.subr.mxu0 0.0
    %197 = vmatpush1.msra.mxu0 0.0
    %198 = vmatprep.subr.mxu0 0.0
    %199 = vmatpush1.msra.mxu0 0.0
    %200 = vmatprep.subr.mxu0 0.0
    %201 = vmatpush1.msra.mxu0 0.0
    %202 = vmatprep.subr.mxu0 0.0
    %203 = vmatpush1.msra.mxu0 0.0
    %204 = vmatprep.subr.mxu0 0.0
    %205 = vmatpush1.msra.mxu0 0.0
    %206 = vmatprep.subr.mxu0 0.0
    %207 = vmatpush1.msra.mxu0 0.0
    %208 = vmatprep.subr.mxu0 0.0
    %209 = vmatpush1.msra.mxu0 0.0
    %210 = vmatprep.mubr.f32.mxu0 0.0
    %211 = vmatmul.mubr.f32.gmra.mrb[0].mxu0 %v73
    %v212 = vpop.f32.mrb[0].mxu0
    %v213 = vadd.f32 %v67, %v212
    %v214 = vpop.f32.mrb[0].mxu0
    %215 = vdwg.mxu0
    %216 = vst [vmem:[#allocation7] sm:$0xff] %v142
    %217 = vst [vmem:[#allocation7 + $0x8] sm:$0xff] %v144
    %218 = vst [vmem:[#allocation7 + $0x10] sm:$0xff] %v213
    // Predicated region
    $region22: #{tpu_custom_call.1} parent=1 // pred_check
      _
    $region23: #{tpu_custom_call.1} parent=1 // pred_check_branch
      %220 = sbr.rel (0) target = $region25
    $region24: #{tpu_custom_call.1} parent=1 // pred_region
      %s222 = ssub.s32 384, 384
      %223 = vsyncadd [#allocation4], %s222
      %s225 = sshll.u32 [#allocation7], 4
      %s226 = int_to_ptr.vmem [resolvable:$true] %s225
      %228 = dma.vmem_to_hbm [thread:$0]  %s226, 384, %s3, [#allocation4]
    $region25: #{tpu_custom_call.1} parent=1 // pred_fallthru
      _
    // Predicated region
    $region26: #{tpu_custom_call.1} parent=1 // pred_check
      _
    $region27: #{tpu_custom_call.1} parent=1 // pred_check_branch
      %230 = sbr.rel (0) target = $region29
    $region28: #{tpu_custom_call.1} parent=1 // pred_region
      %231 = dma.done [#allocation4], 384
    $region29: #{tpu_custom_call.1} parent=1 // pred_fallthru
      _
    %232 = vsyncpa [#allocation3], 1
    %233 = vsyncpa [#allocation6], 1
    %234 = vsyncpa [#allocation4], 1

</llo_original>
